<compile_context>
chip_gen: v5e
topology: v5e:2x2
jax: 0.10.0
libtpu: 0.0.40
codegen_flags: <defaults>
</compile_context>

<pallas_src>
import functools

import jax
import jax.numpy as jnp
from jax.experimental import pallas as pl
from jax.experimental.pallas import tpu as pltpu


# ----------------------------------------------------------------------------
# Kernels
# ----------------------------------------------------------------------------
def _softmax_kernel(x_ref, o_ref, *, tau):
    # Numerically stable softmax along the lane (last) axis, f32 compute.
    # TODO(synk): for bf16 inputs, exp could be computed in bf16 after the f32
    # max-subtract on v6e/v7x to halve EUP work; inputs here are f32.
    xf = x_ref[...].astype(jnp.float32) * (1.0 / tau)
    D = xf.shape[-1]

    if D % 128 == 0 and D > 128:
        # Lane-chunk pre-reduce: elementwise (VALU) max/add across 128-wide
        # chunks, then ONE cross-lane (XLU) reduce on a (tm, 128) slab.
        nch = D // 128
        m128 = xf[:, 0:128]
        for c in range(1, nch):
            m128 = jnp.maximum(m128, xf[:, c * 128:(c + 1) * 128])
        m = jnp.max(m128, axis=-1, keepdims=True)
        e = jnp.exp(xf - m)
        s128 = e[:, 0:128]
        for c in range(1, nch):
            s128 = s128 + e[:, c * 128:(c + 1) * 128]
        s = jnp.sum(s128, axis=-1, keepdims=True)
    else:
        # Fallback (D < 128 or not a multiple of 128): plain lane reductions,
        # masked partial-lane stores on the output.
        # TODO(synk): for very small D, pack k = 128//D independent rows per
        # 128-lane group with a segmented reduction to get lane-dense stores.
        m = jnp.max(xf, axis=-1, keepdims=True)
        e = jnp.exp(xf - m)
        s = jnp.sum(e, axis=-1, keepdims=True)

    # EUP approximate reciprocal of the (tm, 1) row-sum + one Newton step
    # (~f32 precision); the per-element op is then just a broadcast multiply.
    r = pl.reciprocal(s, approx=True)
    r = r * (2.0 - s * r)
    o_ref[...] = (e * r).astype(o_ref.dtype)


def _hard_onehot_kernel(x_ref, o_ref):
    # Forward value of (alpha_hard - alpha.detach() + alpha) is exactly the
    # one-hot of the (first) argmax, and argmax(softmax(x/tau)) == argmax(x)
    # for tau > 0 -> no exp / sum / divide needed in this mode.
    # TODO(synk): straight-through gradient (detach trick) is not expressed;
    # forward-only kernel (no custom_vjp).
    xf = x_ref[...].astype(jnp.float32)
    m = jnp.max(xf, axis=-1, keepdims=True)
    D = xf.shape[-1]
    lane_idx = jax.lax.broadcasted_iota(jnp.int32, xf.shape, xf.ndim - 1)
    # torch .max returns the FIRST index of the maximum on ties.
    first_max = jnp.min(jnp.where(xf == m, lane_idx, D), axis=-1, keepdims=True)
    o_ref[...] = (lane_idx == first_max).astype(o_ref.dtype)


def _hard_index_kernel(x_ref, o_ref):
    # Index-only variant: (tm, 1) int32 argmax indices -> D-x smaller writeback
    # for consumers that only need the hard assignment.
    xf = x_ref[...].astype(jnp.float32)
    m = jnp.max(xf, axis=-1, keepdims=True)
    D = xf.shape[-1]
    lane_idx = jax.lax.broadcasted_iota(jnp.int32, xf.shape, xf.ndim - 1)
    first_max = jnp.min(jnp.where(xf == m, lane_idx, D), axis=-1, keepdims=True)
    o_ref[...] = first_max


# ----------------------------------------------------------------------------
# Tiling / chip heuristics
# ----------------------------------------------------------------------------
def _num_tensorcores():
    """Best-effort TensorCores-per-chip (grid 'parallel' axis shards across
    them): v7x has 2, v5e/v6e have 1. Falls back to 1 if unknown."""
    try:
        dev = jax.devices()[0]
        nc = getattr(dev, "num_cores", None)
        if nc:
            return int(nc)
        kind = str(getattr(dev, "device_kind", "")).lower()
        if "v7" in kind:
            return 2
    except Exception:
        pass
    return 1


def _choose_row_tile(num_rows, d, num_tc):
    """Row-tile heuristic.

    1-TC chips (v5e/v6e): take the biggest tile (per-buffer target ~4 MiB)
    that amortizes the ~0.35us/step pipeline overhead -- no forced block
    split.  Multi-TC chips (v7x, 64 MiB/TC VMEM): per-buffer target ~2 MiB,
    and shrink the tile only enough to give >=2 (ideally 4) blocks per core,
    never below ~1 MiB per buffer.
    """
    bytes_per_row = max(d, 1) * 4                    # f32 worst case
    if num_rows <= 8:
        return max(num_rows, 1)                      # single full-extent block

    target_bytes = (4 << 20) if num_tc <= 1 else (2 << 20)
    tm = target_bytes // bytes_per_row
    tm = max(8, min(int(tm), 4096))
    tm -= tm % 8
    # Never exceed the (8-rounded) row extent.
    tm = min(tm, max(8, (num_rows // 8) * 8))

    if num_tc > 1:
        want_blocks = 4 * num_tc                     # ~4 blocks per TensorCore
        tm_for_blocks = -(-num_rows // want_blocks)  # ceil
        tm_for_blocks = max(8, ((tm_for_blocks + 7) // 8) * 8)
        min_tile_rows = max(8, ((1 << 20) // bytes_per_row // 8) * 8)
        tm = min(tm, max(tm_for_blocks, min_tile_rows))
    return max(tm, 8)


def _vmem_limit_bytes(tm, d, in_itemsize, out_itemsize, out_cols=None):
    """Scale the scoped-VMEM limit from the chosen tile (double-buffered in/out
    + ~3 f32 intermediates + slack), capped below physical VMEM."""
    d = max(d, 1)
    out_cols = d if out_cols is None else out_cols
    tile_in = tm * d * in_itemsize
    tile_out = tm * out_cols * out_itemsize
    tile_f32 = tm * d * 4
    need = 2 * tile_in + 2 * tile_out + 3 * tile_f32 + (4 << 20)
    try:
        phys = int(pltpu.get_tpu_info().vmem_capacity_bytes)
    except Exception:
        phys = 64 << 20                              # v7x has the smallest per-TC VMEM
    hi = max(phys - (8 << 20), 16 << 20)
    return int(min(max(need, 32 << 20), hi))
    # TODO(synk): for enormous D (tile of 8 rows still exceeding `hi`), an
    # online / lane-chunked softmax over D would be needed; not implemented.


# ----------------------------------------------------------------------------
# Wrapper
# ----------------------------------------------------------------------------
def similarity(log_alpha, tau=0.2, hard=False, *, out_dtype=None,
               hard_index_only=False, donate_input=False, row_tile=None):
    """Pallas implementation of Similarity.forward for normalise_dim=-1.

    out_dtype:        optional output dtype for soft / one-hot mode (e.g.
                      jnp.bfloat16) -- compute stays f32, cast on store.
    hard_index_only:  if True (with hard=True), return (..., 1) int32 argmax
                      indices instead of the dense one-hot.
    donate_input:     alias the output onto the input HBM buffer (only when
                      shapes/dtypes match and the caller donates log_alpha).
    """
    orig_shape = log_alpha.shape
    D = orig_shape[-1]
    x2d = log_alpha.reshape(-1, D)
    R = x2d.shape[0]
    out_dtype = log_alpha.dtype if out_dtype is None else jnp.dtype(out_dtype)

    num_tc = _num_tensorcores()
    tm = _choose_row_tile(R, D, num_tc) if row_tile is None else int(row_tile)
    n_blocks = pl.cdiv(R, tm)

    index_only = bool(hard) and bool(hard_index_only)
    if index_only:
        kernel = _hard_index_kernel
        out_shape = jax.ShapeDtypeStruct((R, 1), jnp.int32)
        out_spec = pl.BlockSpec((tm, 1), lambda i: (i, 0))
        out_itemsize, out_cols = 4, 1
    else:
        kernel = _hard_onehot_kernel if hard else functools.partial(
            _softmax_kernel, tau=float(tau))
        out_shape = jax.ShapeDtypeStruct((R, D), out_dtype)
        out_spec = pl.BlockSpec((tm, D), lambda i: (i, 0))
        out_itemsize, out_cols = jnp.dtype(out_dtype).itemsize, D

    in_itemsize = jnp.dtype(log_alpha.dtype).itemsize
    vmem_limit = _vmem_limit_bytes(tm, D, in_itemsize, out_itemsize, out_cols)

    aliases = {}
    if donate_input and not index_only and out_dtype == x2d.dtype:
        aliases = {0: 0}

    out = pl.pallas_call(
        kernel,
        out_shape=out_shape,
        grid_spec=pltpu.PrefetchScalarGridSpec(
            num_scalar_prefetch=0,
            grid=(n_blocks,),
            in_specs=[pl.BlockSpec((tm, D), lambda i: (i, 0))],
            out_specs=out_spec,
        ),
        compiler_params=pltpu.CompilerParams(
            dimension_semantics=("parallel",),
            vmem_limit_bytes=vmem_limit,
        ),
        input_output_aliases=aliases,
    )(x2d)

    if index_only:
        return out.reshape(orig_shape[:-1] + (1,))
    return out.reshape(orig_shape)


# ----------------------------------------------------------------------------
# Self-test
# ----------------------------------------------------------------------------
if __name__ == "__main__":
    key = jax.random.PRNGKey(0)
    B, S, D = 2, 8, 128
    log_alpha = jax.random.normal(key, (B, S, D), dtype=jnp.float32)
    tau = 0.2

    # Soft mode.
    out = jax.block_until_ready(similarity(log_alpha, tau=tau, hard=False))
    ref = jax.nn.softmax(log_alpha / tau, axis=-1)
    assert out.shape == log_alpha.shape
    assert jnp.allclose(out, ref, atol=2e-5, rtol=2e-5)

    # Hard mode, dense one-hot output (forward value of the straight-through).
    out_hard = jax.block_until_ready(similarity(log_alpha, tau=tau, hard=True))
    ref_hard = jax.nn.one_hot(jnp.argmax(log_alpha, axis=-1), D, dtype=jnp.float32)
    assert jnp.allclose(out_hard, ref_hard)

    # Hard mode, index-only output (D-x smaller writeback).
    idx = jax.block_until_ready(
        similarity(log_alpha, tau=tau, hard=True, hard_index_only=True))
    assert idx.shape == (B, S, 1)
    assert jnp.array_equal(idx[..., 0],
                           jnp.argmax(log_alpha, axis=-1).astype(jnp.int32))

    # bf16 output option (compute f32, cast on store).
    out_bf16 = jax.block_until_ready(
        similarity(log_alpha, tau=tau, out_dtype=jnp.bfloat16))
    assert out_bf16.dtype == jnp.bfloat16
    assert jnp.allclose(out_bf16.astype(jnp.float32), ref, atol=1e-2, rtol=1e-2)

    # D > 128, multiple of 128: exercises the lane-chunk pre-reduce path.
    x256 = jax.random.normal(jax.random.PRNGKey(2), (B, S, 256), dtype=jnp.float32)
    out256 = jax.block_until_ready(similarity(x256, tau=tau))
    assert jnp.allclose(out256, jax.nn.softmax(x256 / tau, axis=-1),
                        atol=2e-5, rtol=2e-5)

    # D not a multiple of 128: documented masked-store fallback path.
    x96 = jax.random.normal(jax.random.PRNGKey(3), (2, 5, 96), dtype=jnp.float32)
    out96 = jax.block_until_ready(similarity(x96, tau=tau))
    assert jnp.allclose(out96, jax.nn.softmax(x96 / tau, axis=-1),
                        atol=2e-5, rtol=2e-5)

    # Larger, non-divisible row count: multiple grid blocks + masked tail tile.
    B2, S2 = 6, 700  # R = 4200 rows
    big = jax.random.normal(jax.random.PRNGKey(1), (B2, S2, D), dtype=jnp.float32)
    out_big = jax.block_until_ready(similarity(big, tau=tau))
    assert jnp.allclose(out_big, jax.nn.softmax(big / tau, axis=-1),
                        atol=2e-5, rtol=2e-5)

    print("KERNEL_OK")
</pallas_src>

<mosaic_0001>
module attributes {stable_mosaic.version = 11 : i64} {
  func.func @_softmax_kernel(%arg0: i32, %arg1: memref<16x128xf32, #tpu.memory_space<vmem>>, %arg2: memref<16x128xf32, #tpu.memory_space<vmem>>) attributes {dimension_semantics = [#tpu.dimension_semantics<parallel>], iteration_bounds = array<i64: 1>, scalar_prefetch = 0 : i64, scratch_operands = 0 : i64, tpu.core_type = #tpu.core_type<tc>, window_params = [{transform_indices = @transform_0, window_bounds = array<i64: 16, 128>}, {transform_indices = @transform_1, window_bounds = array<i64: 16, 128>}]} {
    %c0 = arith.constant 0 : index
    %c0_0 = arith.constant 0 : index
    %0 = vector.load %arg1[%c0, %c0_0] : memref<16x128xf32, #tpu.memory_space<vmem>>, vector<16x128xf32>
    %cst = arith.constant 5.000000e+00 : f32
    %1 = vector.broadcast %cst : f32 to vector<16x128xf32>
    %2 = arith.mulf %0, %1 : vector<16x128xf32>
    %cst_1 = arith.constant dense<0xFF800000> : vector<16xf32>
    %3 = vector.multi_reduction <maximumf>, %2, %cst_1 [1] : vector<16x128xf32> to vector<16xf32>
    %4 = vector.shape_cast %3 : vector<16xf32> to vector<16x1xf32>
    %5 = vector.broadcast %4 : vector<16x1xf32> to vector<16x128xf32>
    %6 = arith.subf %2, %5 : vector<16x128xf32>
    %7 = math.exp %6 : vector<16x128xf32>
    %cst_2 = arith.constant dense<0.000000e+00> : vector<16xf32>
    %8 = vector.multi_reduction <add>, %7, %cst_2 [1] : vector<16x128xf32> to vector<16xf32>
    %9 = vector.shape_cast %8 : vector<16xf32> to vector<16x1xf32>
    %10 = tpu.reciprocal %9 {approx = true} : vector<16x1xf32> -> vector<16x1xf32>
    %11 = arith.mulf %9, %10 : vector<16x1xf32>
    %cst_3 = arith.constant 2.000000e+00 : f32
    %12 = vector.broadcast %cst_3 : f32 to vector<16x1xf32>
    %13 = arith.subf %12, %11 : vector<16x1xf32>
    %14 = arith.mulf %10, %13 : vector<16x1xf32>
    %15 = vector.broadcast %14 : vector<16x1xf32> to vector<16x128xf32>
    %16 = arith.mulf %7, %15 : vector<16x128xf32>
    %c0_4 = arith.constant 0 : index
    %c0_5 = arith.constant 0 : index
    %17 = vector.load %arg2[%c0_4, %c0_5] : memref<16x128xf32, #tpu.memory_space<vmem>>, vector<16x128xf32>
    tpu.vector_store %arg2[%c0_4, %c0_5], %16 {strides = array<i32>} : memref<16x128xf32, #tpu.memory_space<vmem>>, vector<16x128xf32>,
    return
  }
  func.func @transform_0(%arg0: i32) -> (i32, i32) {
    %c0_i32 = arith.constant 0 : i32
    %c0_i32_0 = arith.constant 0 : i32
    return %arg0, %c0_i32 : i32, i32
  }
  func.func @transform_1(%arg0: i32) -> (i32, i32) {
    %c0_i32 = arith.constant 0 : i32
    %c0_i32_0 = arith.constant 0 : i32
    return %arg0, %c0_i32 : i32, i32
  }
}

</mosaic_0001>

<llo_original>
// kernel: tpu_custom_call.1
$region0: #{tpu_custom_call.1}
  #allocation0 [shape = 'u32[]', space=smem, size = 0x4, offset = 0x4, fixed_abs, tag = 'smem constant byte address 0x4 - core index']
  #allocation1 [shape = 'u32[72,128]{1,0:T(1,128)}', space=vmem, size = 0x9000, scoped, tag = 'internal scratch']
  %s0 = inlined_call_operand.hbm [shape: f32[16,128], index: 0, kind: input, shape index: {}]
  %s1 = inlined_call_operand.hbm [shape: f32[16,128], index: 1, kind: output, shape index: {}]
  %s2 = sld [smem:[#allocation0]]
  $region18: #{tpu_custom_call.1} parent=0
    _
  %s4 = ssub.s32 1, %s2
  %s5 = scalar_select 0, %s4, %s2
  $region1: #{tpu_custom_call.1} parent=0
    #allocation2 [shape = 'u8[8192]{0}', space=vmem, size = 0x2000, scoped, tag = 'input window, operand 0, single buffered']
    #allocation3 [shape = 's32[1]{0}', space=sflag, size = 0x4, scoped, tag = 'scoped memory for tpu_custom_call.1']
    #allocation4 [shape = 's32[1]{0}', space=sflag, size = 0x4, scoped, tag = 'scoped memory for tpu_custom_call.1']
    #allocation5 [shape = 'u8[8192]{0}', space=vmem, size = 0x2000, scoped, tag = 'output window, operand 0, single buffered']
    %6 = vsyncpa [#allocation3], 0
    %7 = vsyncpa [#allocation4], 0
    // Predicated region
    $region2: #{tpu_custom_call.1} parent=1 // pred_check
      _
    $region3: #{tpu_custom_call.1} parent=1 // pred_check_branch
      %9 = sbr.rel (0) target = $region5
    $region4: #{tpu_custom_call.1} parent=1 // pred_region
      %11 = vsyncadd [#allocation3], 0
      %s12 = sshll.u32 %s0, 4
      %s13 = int_to_ptr.hbm [resolvable:$true] %s12
      %s14 = sshll.u32 [#allocation2], 4
      %s15 = int_to_ptr.vmem [resolvable:$true] %s14
      %20 = dma.hbm_to_vmem [thread:$0]  %s13, 256, %s15, [#allocation3], 128, 128, 8
    $region5: #{tpu_custom_call.1} parent=1 // pred_fallthru
      _
    // Predicated region
    $region6: #{tpu_custom_call.1} parent=1 // pred_check
      _
    $region7: #{tpu_custom_call.1} parent=1 // pred_check_branch
      %22 = sbr.rel (0) target = $region9
    $region8: #{tpu_custom_call.1} parent=1 // pred_region
      %24 = dma.done [#allocation3], 256
    $region9: #{tpu_custom_call.1} parent=1 // pred_fallthru
      _
    %v25 = vld [vmem:[#allocation2] sm:$0xff]
    %v26 = vld [vmem:[#allocation2 + $0x8] sm:$0xff]
    %v27 = vmul.f32 %v25, 5.0
    %v28 = vmul.f32 %v26, 5.0
    %29 = vmax.xlane.f32.xlu0 %v27
    %v30 = vpop.xlane.xlu0 %29
    %31 = vmax.xlane.f32.xlu0 %v28
    %v32 = vpop.xlane.xlu0 %31
    %v33 = vsub.f32 %v27, %v30
    %v34 = vsub.f32 %v28, %v32
    %v35 = vmul.f32 %v33, 1.442695
    %v36 = vpow.pop %v35
    %v37 = vmul.f32 %v34, 1.442695
    %v38 = vpow.pop %v37
    %39 = vadd.xlane.f32.xlu0 %v36
    %v40 = vpop.xlane.xlu0 %39
    %41 = vadd.xlane.f32.xlu0 %v38
    %v42 = vpop.xlane.xlu0 %41
    %v43 = vrcp.pop %v40
    %v44 = vrcp.pop %v42
    %v45 = vmul.f32 %v40, %v43
    %v46 = vmul.f32 %v42, %v44
    %v47 = vsub.f32 2.0, %v45
    %v48 = vsub.f32 2.0, %v46
    %v49 = vmul.f32 %v43, %v47
    %v50 = vmul.f32 %v44, %v48
    %v51 = vmul.f32 %v36, %v49
    %v52 = vmul.f32 %v38, %v50
    %53 = vst [vmem:[#allocation5] sm:$0xff] %v51
    %54 = vst [vmem:[#allocation5 + $0x8] sm:$0xff] %v52
    // Predicated region
    $region10: #{tpu_custom_call.1} parent=1 // pred_check
      _
    $region11: #{tpu_custom_call.1} parent=1 // pred_check_branch
      %56 = sbr.rel (0) target = $region13
    $region12: #{tpu_custom_call.1} parent=1 // pred_region
      %58 = vsyncadd [#allocation4], 0
      %s59 = sshll.u32 [#allocation5], 4
      %s60 = int_to_ptr.vmem [resolvable:$true] %s59
      %s61 = sshll.u32 %s1, 4
      %s62 = int_to_ptr.hbm [resolvable:$true] %s61
      %67 = dma.vmem_to_hbm [thread:$0]  %s60, 256, %s62, [#allocation4], 128, 128, 8
    $region13: #{tpu_custom_call.1} parent=1 // pred_fallthru
      _
    // Predicated region
    $region14: #{tpu_custom_call.1} parent=1 // pred_check
      _
    $region15: #{tpu_custom_call.1} parent=1 // pred_check_branch
      %69 = sbr.rel (0) target = $region17
    $region16: #{tpu_custom_call.1} parent=1 // pred_region
      %71 = dma.done [#allocation4], 256
    $region17: #{tpu_custom_call.1} parent=1 // pred_fallthru
      _
    %72 = vsyncpa [#allocation3], 1
    %73 = vsyncpa [#allocation4], 1

</llo_original>
